<compile_context>
chip_gen: v6e
topology: v6e:2x2x1
jax: 0.10.0
libtpu: 0.0.40
codegen_flags: <defaults>
</compile_context>

<pallas_src>
import jax
import jax.numpy as jnp
from jax.experimental import pallas as pl
from jax.experimental.pallas import tpu as pltpu


def abs_pos_embed_kernel(x_ref, pos_ref, o_ref):
    # Elementwise broadcast-add of the (1, tf) pos tile onto the (bb, tf)
    # input tile.  Pure VPU work; in-kernel dtype cast of pos is free.
    o_ref[...] = x_ref[...] + pos_ref[...].astype(o_ref.dtype)


def _select_tiles(B, F, itemsize, *, target_bytes=4 << 20):
    """Pick (bb, tf): batch rows per step and lane-tile along the flat N*D axis.

    Guarantees the block shape is legal ((bb, tf) each a sublane/lane multiple
    or the full extent) and the x tile stays <= target_bytes.
    """
    sub = 8 if itemsize >= 4 else (16 if itemsize == 2 else 32)
    min_bb = B if B <= sub else sub

    # Lane tile: full flattened row if it fits the per-tile byte target even
    # at the minimum legal batch block; otherwise a 128-multiple row slice
    # (cdiv grid handles the padded tail tile).
    per_row_cap = max(128, target_bytes // (min_bb * itemsize))
    if F <= per_row_cap:
        tf = F                               # full extent: legal at any size
    else:
        tf = (per_row_cap // 128) * 128      # lane-aligned tile

    # Batch block: grow toward the byte target, sublane-aligned (or full B).
    bb_want = max(1, target_bytes // max(1, tf * itemsize))
    if bb_want >= B:
        bb = B                               # full extent: no alignment needed
    else:
        bb = max(sub, (bb_want // sub) * sub)
        if bb >= B:
            bb = B
    return bb, tf


def abs_pos_embedding_pallas(x, pos_embed, *, target_tile_bytes=4 << 20,
                             donate_x=False):
    """x: (B, N, D); pos_embed: (1, N, D). Returns x + pos_embed (broadcast over B)."""
    B, N, D = x.shape
    assert pos_embed.shape == (1, N, D), "pos_embed must be (1, N, D)"

    # Lane-density fix: flatten the last two dims (row-major reshape is free).
    F = N * D
    x2 = x.reshape(B, F)
    pos2 = pos_embed.reshape(1, F)

    itemsize = jnp.dtype(x.dtype).itemsize
    bb, tf = _select_tiles(B, F, itemsize, target_bytes=target_tile_bytes)
    n_flat = pl.cdiv(F, tf)
    n_batch = pl.cdiv(B, bb)

    cost = pl.CostEstimate(
        flops=B * F,                                # one add per element
        transcendentals=0,
        bytes_accessed=2 * B * F * itemsize         # read x + write out
        + F * jnp.dtype(pos_embed.dtype).itemsize,  # read pos once
    )

    out = pl.pallas_call(
        abs_pos_embed_kernel,
        out_shape=jax.ShapeDtypeStruct((B, F), x.dtype),
        grid_spec=pltpu.PrefetchScalarGridSpec(
            num_scalar_prefetch=0,
            # flat-tile axis OUTERMOST -> pos block index is constant across
            # the inner batch axis, so the pos tile stays resident in VMEM.
            grid=(n_flat, n_batch),
            in_specs=[
                pl.BlockSpec((bb, tf), lambda i, b: (b, i)),  # x tile
                pl.BlockSpec((1, tf), lambda i, b: (0, i)),   # pos tile (b-invariant)
            ],
            out_specs=pl.BlockSpec((bb, tf), lambda i, b: (b, i)),
        ),
        compiler_params=pltpu.CompilerParams(
            dimension_semantics=("parallel", "parallel"),
            # ~24 MiB worst-case working set; 32 MiB is the v6e/v7x default
            # scoped limit and well under physical VMEM on every generation.
            vmem_limit_bytes=32 * 1024 * 1024,
        ),
        cost_estimate=cost,
        input_output_aliases=({0: 0} if donate_x else {}),
    )(x2, pos2)

    return out.reshape(B, N, D)


def abs_pos_embedding_reference(x, pos_embed):
    return x + pos_embed


def _conv_output_size(img_size, kernel_size, stride, padding=0):
    return int((img_size - kernel_size + 2 * padding) / stride + 1)


if __name__ == "__main__":
    key = jax.random.PRNGKey(0)

    # Small shapes consistent with the module's constructor.
    img_size, patch_size, dim = 16, 4, 32
    cls = True
    B = 2
    stride = patch_size
    output_size = _conv_output_size(img_size, patch_size, stride)
    num_patches = output_size ** 2            # 16
    N = num_patches + int(cls)                # 17 (deliberately not 8-aligned)

    k_x, k_pos = jax.random.split(key, 2)
    x = jax.random.normal(k_x, (B, N, dim), dtype=jnp.float32)
    pos_embed = jax.random.normal(k_pos, (1, N, dim), dtype=jnp.float32) * 0.02

    out = abs_pos_embedding_pallas(x, pos_embed)
    out = jax.block_until_ready(out)

    ref = abs_pos_embedding_reference(x, pos_embed)
    assert out.shape == (B, N, dim)
    assert jnp.allclose(out, ref, atol=1e-6, rtol=1e-6), "mismatch vs reference"

    print("KERNEL_OK")
</pallas_src>

<mosaic_0001>
module attributes {stable_mosaic.version = 11 : i64} {
  func.func @abs_pos_embed_kernel(%arg0: i32, %arg1: i32, %arg2: memref<2x544xf32, #tpu.memory_space<vmem>>, %arg3: memref<1x544xf32, #tpu.memory_space<vmem>>, %arg4: memref<2x544xf32, #tpu.memory_space<vmem>>) attributes {dimension_semantics = [#tpu.dimension_semantics<parallel>, #tpu.dimension_semantics<parallel>], iteration_bounds = array<i64: 1, 1>, scalar_prefetch = 0 : i64, scratch_operands = 0 : i64, tpu.core_type = #tpu.core_type<tc>, window_params = [{transform_indices = @transform_0, window_bounds = array<i64: 2, 544>}, {transform_indices = @transform_1, window_bounds = array<i64: 1, 544>}, {transform_indices = @transform_2, window_bounds = array<i64: 2, 544>}]} {
    %c0 = arith.constant 0 : index
    %c0_0 = arith.constant 0 : index
    %0 = vector.load %arg2[%c0, %c0_0] : memref<2x544xf32, #tpu.memory_space<vmem>>, vector<2x544xf32>
    %c0_1 = arith.constant 0 : index
    %c0_2 = arith.constant 0 : index
    %1 = vector.load %arg3[%c0_1, %c0_2] : memref<1x544xf32, #tpu.memory_space<vmem>>, vector<1x544xf32>
    %2 = vector.broadcast %1 : vector<1x544xf32> to vector<2x544xf32>
    %3 = arith.addf %0, %2 : vector<2x544xf32>
    %c0_3 = arith.constant 0 : index
    %c0_4 = arith.constant 0 : index
    %4 = vector.load %arg4[%c0_3, %c0_4] : memref<2x544xf32, #tpu.memory_space<vmem>>, vector<2x544xf32>
    tpu.vector_store %arg4[%c0_3, %c0_4], %3 {strides = array<i32>} : memref<2x544xf32, #tpu.memory_space<vmem>>, vector<2x544xf32>,
    return
  }
  func.func @transform_0(%arg0: i32, %arg1: i32) -> (i32, i32) {
    %c0_i32 = arith.constant 0 : i32
    return %arg1, %arg0 : i32, i32
  }
  func.func @transform_1(%arg0: i32, %arg1: i32) -> (i32, i32) {
    %c0_i32 = arith.constant 0 : i32
    %c0_i32_0 = arith.constant 0 : i32
    return %c0_i32, %arg0 : i32, i32
  }
  func.func @transform_2(%arg0: i32, %arg1: i32) -> (i32, i32) {
    %c0_i32 = arith.constant 0 : i32
    return %arg1, %arg0 : i32, i32
  }
}

</mosaic_0001>

<llo_original>
// kernel: tpu_custom_call.1
$region0: #{tpu_custom_call.1}
  #allocation0 [shape = 'u32[]', space=smem, size = 0x4, offset = 0x4, fixed_abs, tag = 'smem constant byte address 0x4 - core index']
  #allocation1 [shape = 'u32[144,128]{1,0:T(1,128)}', space=vmem, size = 0x12000, scoped, tag = 'internal scratch']
  %s0 = inlined_call_operand.hbm [shape: f32[2,544], index: 0, kind: input, shape index: {}]
  %s1 = inlined_call_operand.hbm [shape: f32[1,544], index: 1, kind: input, shape index: {}]
  %s2 = inlined_call_operand.hbm [shape: f32[2,544], index: 2, kind: output, shape index: {}]
  %s3 = sld [smem:[#allocation0]]
  $region26: #{tpu_custom_call.1} parent=0
    _
  %s5 = ssub.s32 1, %s3
  %s6 = scalar_select 0, %s5, %s3
  $region1: #{tpu_custom_call.1} parent=0
    #allocation2 [shape = 'u8[5120]{0}', space=vmem, size = 0x1400, scoped, tag = 'input window, operand 0, single buffered']
    #allocation3 [shape = 's32[1]{0}', space=sflag, size = 0x4, scoped, tag = 'scoped memory for tpu_custom_call.1']
    #allocation4 [shape = 's32[1]{0}', space=sflag, size = 0x4, scoped, tag = 'scoped memory for tpu_custom_call.1']
    #allocation5 [shape = 'u8[2560]{0}', space=vmem, size = 0xc00, scoped, tag = 'input window, operand 1, single buffered']
    #allocation6 [shape = 's32[1]{0}', space=sflag, size = 0x4, scoped, tag = 'scoped memory for tpu_custom_call.1']
    #allocation7 [shape = 'u8[5120]{0}', space=vmem, size = 0x1400, scoped, tag = 'output window, operand 0, single buffered']
    %7 = vsyncpa [#allocation3], 0
    %8 = vsyncpa [#allocation6], 0
    %9 = vsyncpa [#allocation4], 0
    // Predicated region
    $region2: #{tpu_custom_call.1} parent=1 // pred_check
      _
    $region3: #{tpu_custom_call.1} parent=1 // pred_check_branch
      %11 = sbr.rel (0) target = $region5
    $region4: #{tpu_custom_call.1} parent=1 // pred_region
      %s13 = ssub.s32 160, 160
      %14 = vsyncadd [#allocation3], %s13
      %s16 = sshll.u32 [#allocation2], 4
      %s17 = int_to_ptr.vmem [resolvable:$true] %s16
      %19 = dma.hbm_to_vmem [thread:$0]  %s0, 160, %s17, [#allocation3]
    $region5: #{tpu_custom_call.1} parent=1 // pred_fallthru
      _
    // Predicated region
    $region6: #{tpu_custom_call.1} parent=1 // pred_check
      _
    $region7: #{tpu_custom_call.1} parent=1 // pred_check_branch
      %21 = sbr.rel (0) target = $region9
    $region8: #{tpu_custom_call.1} parent=1 // pred_region
      %s23 = ssub.s32 80, 80
      %24 = vsyncadd [#allocation6], %s23
      %s26 = sshll.u32 [#allocation5], 4
      %s27 = int_to_ptr.vmem [resolvable:$true] %s26
      %29 = dma.hbm_to_vmem [thread:$0]  %s1, 80, %s27, [#allocation6]
    $region9: #{tpu_custom_call.1} parent=1 // pred_fallthru
      _
    // Predicated region
    $region10: #{tpu_custom_call.1} parent=1 // pred_check
      _
    $region11: #{tpu_custom_call.1} parent=1 // pred_check_branch
      %31 = sbr.rel (0) target = $region13
    $region12: #{tpu_custom_call.1} parent=1 // pred_region
      %32 = dma.done [#allocation3], 160
    $region13: #{tpu_custom_call.1} parent=1 // pred_fallthru
      _
    // Predicated region
    $region14: #{tpu_custom_call.1} parent=1 // pred_check
      _
    $region15: #{tpu_custom_call.1} parent=1 // pred_check_branch
      %34 = sbr.rel (0) target = $region17
    $region16: #{tpu_custom_call.1} parent=1 // pred_region
      %35 = dma.done [#allocation6], 80
    $region17: #{tpu_custom_call.1} parent=1 // pred_fallthru
      _
    %v36 = vld [vmem:[#allocation2] sm:$0xff]
    %v37 = vld [vmem:[#allocation2 + $0x8] sm:$0x3]
    %v38 = vld [vmem:[#allocation5] sm:$0x1f]
    %v40 = vlaneseq
    %v41 = vshrl.u32 %v40, 7
    %v42 = vsub.s32 0, %v41
    %v43 = vrot.slane %v38, %v42
    %v44 = vlaneseq
    %v45 = vshrl.u32 %v44, 7
    %v46 = vsub.s32 1, %v45
    %v47 = vrot.slane %v38, %v46
    %v48 = vlaneseq
    %v49 = vshrl.u32 %v48, 7
    %v50 = vsub.s32 2, %v49
    %v51 = vrot.slane %v38, %v50
    %v52 = vlaneseq
    %v53 = vshrl.u32 %v52, 7
    %v54 = vsub.s32 3, %v53
    %v55 = vrot.slane %v38, %v54
    %v56 = vlaneseq
    %v57 = vshrl.u32 %v56, 7
    %v58 = vsub.s32 4, %v57
    %v59 = vrot.slane %v38, %v58
    %v60 = vcombine.low %v43, %v47
    %v61 = vcombine.low %v51, %v55
    %v63 = vunpack.c.l.s4 1983009808
    %v64 = vunpack.c.0.s8 %v63
    %v65 = vlaneseq
    %v66 = vshrl.u32 %v65, 7
    %v67 = vsub.s32 %v64, %v66
    %v68 = vrot.slane %v60, %v67
    %v70 = vunpack.c.l.s4 1983009808
    %v71 = vunpack.c.0.s8 %v70
    %v72 = vlaneseq
    %v73 = vshrl.u32 %v72, 7
    %v74 = vsub.s32 %v71, %v73
    %v75 = vrot.slane %v61, %v74
    %v76 = vcombine.low %v68, %v75
    %v78 = vunpack.c.l.s4 1983009808
    %v79 = vunpack.c.0.s8 %v78
    %v80 = vlaneseq
    %v81 = vshrl.u32 %v80, 7
    %v82 = vsub.s32 %v79, %v81
    %v83 = vrot.slane %v59, %v82
    %v86 = vadd.f32 %v36, %v76
    %v87 = vadd.f32 %v37, %v83
    %88 = vst [vmem:[#allocation7] sm:$0xff] %v86
    %vm89 = vcmask 254976
    %90 = vst.msk [vmem:[#allocation7 + $0x8] sm:$0x3] %vm89, %v87
    // Predicated region
    $region18: #{tpu_custom_call.1} parent=1 // pred_check
      _
    $region19: #{tpu_custom_call.1} parent=1 // pred_check_branch
      %92 = sbr.rel (0) target = $region21
    $region20: #{tpu_custom_call.1} parent=1 // pred_region
      %s94 = ssub.s32 160, 160
      %95 = vsyncadd [#allocation4], %s94
      %s97 = sshll.u32 [#allocation7], 4
      %s98 = int_to_ptr.vmem [resolvable:$true] %s97
      %100 = dma.vmem_to_hbm [thread:$0]  %s98, 160, %s2, [#allocation4]
    $region21: #{tpu_custom_call.1} parent=1 // pred_fallthru
      _
    // Predicated region
    $region22: #{tpu_custom_call.1} parent=1 // pred_check
      _
    $region23: #{tpu_custom_call.1} parent=1 // pred_check_branch
      %102 = sbr.rel (0) target = $region25
    $region24: #{tpu_custom_call.1} parent=1 // pred_region
      %103 = dma.done [#allocation4], 160
    $region25: #{tpu_custom_call.1} parent=1 // pred_fallthru
      _
    %104 = vsyncpa [#allocation3], 1
    %105 = vsyncpa [#allocation6], 1
    %106 = vsyncpa [#allocation4], 1

</llo_original>
